<compile_context>
chip_gen: v7x
topology: tpu7x:2x2x1
jax: 0.10.0
libtpu: 0.0.40
codegen_flags: <defaults>
</compile_context>

<pallas_src>
import math
import functools

import jax
import jax.numpy as jnp
from jax.experimental import pallas as pl
from jax.experimental.pallas import tpu as pltpu


def _build_positional_encodings(hidden_dim: int, max_len: int) -> jnp.ndarray:
    """Deterministic sin/cos table, same formula as the PyTorch __init__."""
    position = jnp.arange(0, max_len, dtype=jnp.float32)[:, None]          # (L, 1)
    div_term = jnp.exp(
        jnp.arange(0, hidden_dim, 2, dtype=jnp.float32)
        * (-math.log(10000.0) / hidden_dim)
    )                                                                       # (D/2,)
    pe = jnp.zeros((max_len, hidden_dim), dtype=jnp.float32)
    pe = pe.at[:, 0::2].set(jnp.sin(position * div_term))
    pe = pe.at[:, 1::2].set(jnp.cos(position * div_term))
    return pe                                                               # (L, D)


def _pe_dropout_kernel(seed_ref, x_ref, pe_ref, o_ref, *,
                       flat_len, tile_b, tile_t,
                       drop_thresh, inv_keep, apply_dropout):
    # x_ref/o_ref: (TB, T) block of the flattened (B, S*D) view.
    # pe_ref:      (1, T) block of the flattened (1, S*D) PE table.
    val = x_ref[...] + pe_ref[...]          # pe pre-cast in wrapper -> no per-step cast

    if apply_dropout:
        # Stateless counter-based RNG: murmur3 fmix32 of the *global* element
        # index mixed with the seed.  Mask is independent of tiling / grid
        # sharding and never touches the stateful HW PRNG (portable to
        # interpret mode; parallel grid axes trivially safe).
        b0 = pl.program_id(1) * tile_b
        t0 = pl.program_id(0) * tile_t
        row = jax.lax.broadcasted_iota(jnp.int32, val.shape, 0) + b0
        col = jax.lax.broadcasted_iota(jnp.int32, val.shape, 1) + t0
        gid = (row * flat_len + col).astype(jnp.uint32)   # non-negative -> exact

        seed_u = seed_ref[0].astype(jnp.uint32)
        h = gid + (seed_u + jnp.uint32(1)) * jnp.uint32(0x9E3779B9)
        h = h ^ (h >> 16)
        h = h * jnp.uint32(0x85EBCA6B)
        h = h ^ (h >> 13)
        h = h * jnp.uint32(0xC2B2AE35)
        h = h ^ (h >> 16)

        # Inverted dropout: drop iff h < round(p * 2^32)  (uniform uint32).
        keep = h >= jnp.uint32(drop_thresh)
        scale = jnp.asarray(inv_keep, dtype=val.dtype)
        val = jnp.where(keep, val * scale, jnp.zeros_like(val))

    o_ref[...] = val.astype(o_ref.dtype)


def positional_encoding_forward(x, pe_table, *, p_drop=0.0, training=False,
                                seed=0, target_tile_bytes=4 * 1024 * 1024):
    """x: (B, S, D). pe_table: (max_len, D). Returns (B, S, D)."""
    B, S, D = x.shape
    SD = S * D
    dtype = x.dtype
    itemsize = jnp.dtype(dtype).itemsize

    # Flatten (S, D) -> S*D so the kernel's minor axis is lane-dense regardless
    # of D; slice pe like pe[:, :x.size(1)] and pre-cast to activation dtype.
    x2 = x.reshape(B, SD)
    pe2 = pe_table[:S].astype(dtype).reshape(1, SD)
    seed_arr = jnp.array([seed], dtype=jnp.int32)

    # ---- tile selection: (TB, T) block of the (B, S*D) view, ~4 MiB ----
    budget_elems = max(128, target_tile_bytes // itemsize)
    if B * 128 <= budget_elems:
        # Whole batch fits in one block row-group (the common case, and the
        # "block the batch axis" fix for small S*D / decode-sized inputs).
        TB = B
        t_fit = max(budget_elems // max(B, 1), 128)
        T = SD if t_fit >= SD else (t_fit // 128) * 128
    else:
        # Enormous batch: keep the lane dim at 128 and tile batch in 8s.
        TB = max(8, (budget_elems // 128) // 8 * 8)
        T = 128 if SD >= 128 else SD

    num_t = pl.cdiv(SD, T)
    num_b = pl.cdiv(B, TB)

    # ---- dropout constants ----
    p_drop = float(p_drop)
    apply_dropout = bool(training) and p_drop > 0.0
    drop_thresh = min(int(round(p_drop * (1 << 32))), (1 << 32) - 1)
    inv_keep = 1.0 / max(1.0 - p_drop, 1e-12)

    kernel = functools.partial(
        _pe_dropout_kernel,
        flat_len=SD,
        tile_b=TB,
        tile_t=T,
        drop_thresh=drop_thresh,
        inv_keep=inv_keep,
        apply_dropout=apply_dropout,
    )

    out2 = pl.pallas_call(
        kernel,
        out_shape=jax.ShapeDtypeStruct((B, SD), dtype),
        grid_spec=pltpu.PrefetchScalarGridSpec(
            num_scalar_prefetch=1,                 # seed lands in SMEM
            grid=(num_t, num_b),                   # batch innermost -> PE tile reused
            in_specs=[
                # x: (TB, T) tile of the flattened activations.
                pl.BlockSpec((TB, T), lambda t, b, s: (b, t)),
                # pe: (1, T) tile; block index unchanged across consecutive
                # batch steps -> Pallas skips the redundant DMA.
                pl.BlockSpec((1, T), lambda t, b, s: (0, t)),
            ],
            out_specs=pl.BlockSpec((TB, T), lambda t, b, s: (b, t)),
        ),
        compiler_params=pltpu.CompilerParams(
            # No cross-step state (stateless dropout hash), so both axes can be
            # sharded across v7x's two TensorCores; neutral on v5e/v6e.
            dimension_semantics=("parallel", "parallel"),
        ),
        # Elementwise, same shape/dtype: alias the output onto x (input index 1
        # after the scalar-prefetch seed) to drop peak HBM footprint.
        input_output_aliases={1: 0},
        cost_estimate=pl.CostEstimate(
            flops=B * SD,
            transcendentals=0,
            bytes_accessed=(2 * B * SD + SD) * itemsize,
        ),
    )(seed_arr, x2, pe2)

    return out2.reshape(B, S, D)


if __name__ == "__main__":
    hidden_dim = 32
    max_len = 64
    batch = 2
    seq = 8
    dropout_p = 0.1

    pe_table = _build_positional_encodings(hidden_dim, max_len)

    key = jax.random.PRNGKey(0)
    x = jax.random.normal(key, (batch, seq, hidden_dim), dtype=jnp.float32)

    # Eval mode (dropout is identity) — exact match against the reference.
    out_eval = positional_encoding_forward(x, pe_table, p_drop=dropout_p, training=False)
    out_eval = jax.block_until_ready(out_eval)
    ref = x + pe_table[None, :seq, :]
    assert out_eval.shape == (batch, seq, hidden_dim)
    assert jnp.allclose(out_eval, ref, atol=1e-6, rtol=1e-6)

    # Training mode — in-kernel inverted dropout (stateless counter-based hash).
    # Matches torch.nn.Dropout semantics distributionally; the exact mask
    # differs from torch's RNG stream.
    out_train = positional_encoding_forward(
        x, pe_table, p_drop=dropout_p, training=True, seed=123
    )
    out_train = jax.block_until_ready(out_train)
    assert out_train.shape == (batch, seq, hidden_dim)
    scale = 1.0 / (1.0 - dropout_p)
    kept = out_train != 0
    # Kept elements must equal ref * 1/(1-p); dropped elements are zero.
    assert jnp.allclose(jnp.where(kept, out_train, ref * scale), ref * scale,
                        atol=1e-5, rtol=1e-5)
    keep_frac = float(jnp.mean(kept.astype(jnp.float32)))
    assert 0.7 <= keep_frac <= 1.0  # ~0.9 expected, loose statistical bound

    print("KERNEL_OK")
</pallas_src>

<mosaic_0001>
module attributes {stable_mosaic.version = 11 : i64} {
  func.func @_pe_dropout_kernel(%arg0: i32, %arg1: i32, %arg2: memref<1xi32, #tpu.memory_space<smem>>, %arg3: memref<2x256xf32, #tpu.memory_space<vmem>>, %arg4: memref<1x256xf32, #tpu.memory_space<vmem>>, %arg5: memref<2x256xf32, #tpu.memory_space<vmem>>) attributes {dimension_semantics = [#tpu.dimension_semantics<parallel>, #tpu.dimension_semantics<parallel>], iteration_bounds = array<i64: 1, 1>, scalar_prefetch = 1 : i64, scratch_operands = 0 : i64, tpu.core_type = #tpu.core_type<tc>, window_params = [{transform_indices = @transform_0, window_bounds = array<i64: 2, 256>}, {transform_indices = @transform_1, window_bounds = array<i64: 1, 256>}, {transform_indices = @transform_2, window_bounds = array<i64: 2, 256>}]} {
    %c0 = arith.constant 0 : index
    %c0_0 = arith.constant 0 : index
    %0 = vector.load %arg3[%c0, %c0_0] : memref<2x256xf32, #tpu.memory_space<vmem>>, vector<2x256xf32>
    %c0_1 = arith.constant 0 : index
    %c0_2 = arith.constant 0 : index
    %1 = vector.load %arg4[%c0_1, %c0_2] : memref<1x256xf32, #tpu.memory_space<vmem>>, vector<1x256xf32>
    %2 = vector.broadcast %1 : vector<1x256xf32> to vector<2x256xf32>
    %3 = arith.addf %0, %2 : vector<2x256xf32>
    %c0_3 = arith.constant 0 : index
    %c0_4 = arith.constant 0 : index
    %4 = vector.load %arg5[%c0_3, %c0_4] : memref<2x256xf32, #tpu.memory_space<vmem>>, vector<2x256xf32>
    tpu.vector_store %arg5[%c0_3, %c0_4], %3 {strides = array<i32>} : memref<2x256xf32, #tpu.memory_space<vmem>>, vector<2x256xf32>,
    return
  }
  func.func @transform_0(%arg0: i32, %arg1: i32, %arg2: memref<1xi32, #tpu.memory_space<smem>>) -> (i32, i32) {
    %c0_i32 = arith.constant 0 : i32
    return %arg1, %arg0 : i32, i32
  }
  func.func @transform_1(%arg0: i32, %arg1: i32, %arg2: memref<1xi32, #tpu.memory_space<smem>>) -> (i32, i32) {
    %c0_i32 = arith.constant 0 : i32
    %c0_i32_0 = arith.constant 0 : i32
    return %c0_i32, %arg0 : i32, i32
  }
  func.func @transform_2(%arg0: i32, %arg1: i32, %arg2: memref<1xi32, #tpu.memory_space<smem>>) -> (i32, i32) {
    %c0_i32 = arith.constant 0 : i32
    return %arg1, %arg0 : i32, i32
  }
}

</mosaic_0001>

<llo_original>
// kernel: tpu_custom_call.1
$region0: #{tpu_custom_call.1}
  #allocation0 [shape = 'u32[]', space=smem, size = 0x4, offset = 0x4, fixed_abs, tag = 'smem constant byte address 0x4 - core index']
  #allocation1 [shape = 'u32[144,128]{1,0:T(1,128)}', space=vmem, size = 0x12000, scoped, tag = 'internal scratch']
  #allocation2 [shape = 's32[1]{0}', space=sflag, size = 0x4, scoped, tag = 'scoped memory for tpu_custom_call.1']
  #allocation3 [shape = 's32[1]{0:T(128)S(6)}', space=smem, size = 0x200, scoped, tag = 'prefetched SMEM operand 0']
  %s0 = inlined_call_operand.<no memory space> [shape: s32[1], index: 0, kind: input, shape index: {}]
  %s1 = inlined_call_operand.hbm [shape: f32[2,256], index: 1, kind: input, shape index: {}, may-alias: {1,3}]
  %s2 = inlined_call_operand.vmem [shape: f32[1,256], index: 2, kind: input, shape index: {}]
  %s3 = inlined_call_operand.hbm [shape: f32[2,256], index: 3, kind: output, shape index: {}, may-alias: {1,3}]
  %s4 = sld [smem:[#allocation0]]
  $region22: #{tpu_custom_call.1} parent=0
    _
  %s6 = ssub.s32 1, %s4
  %s7 = scalar_select 0, %s6, %s4
  %8 = sst [smem:[#allocation3]] %s0
  $region1: #{tpu_custom_call.1} parent=0
    #allocation4 [shape = 'u8[2048]{0}', space=vmem, size = 0x800, scoped, tag = 'input window, operand 1, single buffered']
    #allocation5 [shape = 's32[1]{0}', space=sflag, size = 0x4, scoped, tag = 'scoped memory for tpu_custom_call.1']
    #allocation6 [shape = 's32[1]{0}', space=sflag, size = 0x4, scoped, tag = 'scoped memory for tpu_custom_call.1']
    #allocation7 [shape = 'u8[2048]{0}', space=vmem, size = 0x800, scoped, tag = 'output window, operand 0, single buffered']
    %9 = vsyncpa [#allocation5], 0
    %10 = vsyncpa [#allocation6], 0
    // Predicated region
    $region2: #{tpu_custom_call.1} parent=1 // pred_check
      _
    $region3: #{tpu_custom_call.1} parent=1 // pred_check_branch
      %12 = sbr.rel (0) target = $region5
    $region4: #{tpu_custom_call.1} parent=1 // pred_region
      %s14 = ssub.s32 64, 64
      %15 = vsyncadd [#allocation5], %s14
      %s17 = sshll.u32 [#allocation4], 4
      %s18 = int_to_ptr.vmem [resolvable:$true] %s17
      %20 = dma.hbm_to_vmem [thread:$0]  %s1, 64, %s18, [#allocation5]
    $region5: #{tpu_custom_call.1} parent=1 // pred_fallthru
      _
    // Predicated region
    $region6: #{tpu_custom_call.1} parent=1 // pred_check
      _
    $region7: #{tpu_custom_call.1} parent=1 // pred_check_branch
      %22 = sbr.rel (0) target = $region9
    $region8: #{tpu_custom_call.1} parent=1 // pred_region
      _
    $region9: #{tpu_custom_call.1} parent=1 // pred_fallthru
      _
    // Predicated region
    $region10: #{tpu_custom_call.1} parent=1 // pred_check
      _
    $region11: #{tpu_custom_call.1} parent=1 // pred_check_branch
      %24 = sbr.rel (0) target = $region13
    $region12: #{tpu_custom_call.1} parent=1 // pred_region
      %25 = dma.done [#allocation5], 64
    $region13: #{tpu_custom_call.1} parent=1 // pred_fallthru
      _
    %v26 = vld [vmem:[#allocation4] sm:$0xf]
    %v27 = vld [vmem:[%s2] sm:$0x3]
    %v29 = vlaneseq
    %v30 = vshrl.u32 %v29, 7
    %v31 = vsub.s32 0, %v30
    %v32 = vrot.slane %v27, %v31
    %v33 = vlaneseq
    %v34 = vshrl.u32 %v33, 7
    %v35 = vsub.s32 1, %v34
    %v36 = vrot.slane %v27, %v35
    %v37 = vcombine.low %v32, %v36
    %v39 = vunpack.c.l.s4 1983009808
    %v40 = vunpack.c.0.s8 %v39
    %v41 = vlaneseq
    %v42 = vshrl.u32 %v41, 7
    %v43 = vsub.s32 %v40, %v42
    %v44 = vrot.slane %v37, %v43
    %v46 = vadd.f32 %v26, %v44
    %47 = vst [vmem:[#allocation7] sm:$0xf] %v46
    // Predicated region
    $region14: #{tpu_custom_call.1} parent=1 // pred_check
      _
    $region15: #{tpu_custom_call.1} parent=1 // pred_check_branch
      %49 = sbr.rel (0) target = $region17
    $region16: #{tpu_custom_call.1} parent=1 // pred_region
      %s51 = ssub.s32 64, 64
      %52 = vsyncadd [#allocation6], %s51
      %s54 = sshll.u32 [#allocation7], 4
      %s55 = int_to_ptr.vmem [resolvable:$true] %s54
      %57 = dma.vmem_to_hbm [thread:$0]  %s55, 64, %s3, [#allocation6]
    $region17: #{tpu_custom_call.1} parent=1 // pred_fallthru
      _
    // Predicated region
    $region18: #{tpu_custom_call.1} parent=1 // pred_check
      _
    $region19: #{tpu_custom_call.1} parent=1 // pred_check_branch
      %59 = sbr.rel (0) target = $region21
    $region20: #{tpu_custom_call.1} parent=1 // pred_region
      %60 = dma.done [#allocation6], 64
    $region21: #{tpu_custom_call.1} parent=1 // pred_fallthru
      _
    %61 = vsyncpa [#allocation5], 1
    %62 = vsyncpa [#allocation6], 1

</llo_original>
